<compile_context>
chip_gen: v7x
topology: tpu7x:2x2x1
jax: 0.10.0
libtpu: 0.0.40
codegen_flags: <defaults>
</compile_context>

<pallas_src>
import jax
import jax.numpy as jnp
from jax.experimental import pallas as pl
from jax.experimental.pallas import tpu as pltpu


# ---------------------------------------------------------------------------
# Hardware / tiling helpers
# ---------------------------------------------------------------------------

def _vmem_capacity_bytes(default=64 * 1024 * 1024):
    """Physical VMEM per TensorCore (128 MiB v5e/v6e, 64 MiB v7x)."""
    try:
        cap = getattr(pltpu.get_tpu_info(), "vmem_capacity_bytes", None)
        if cap:
            return int(cap)
    except Exception:
        pass
    return default


def _round8_down(x):
    return max(8, (int(x) // 8) * 8)


def _pick_class_tile(n_cls, n_ctx, n_suffix, seq_len, ctx_dim, itemsize):
    """Largest class tile fitting the per-TensorCore VMEM budget, a multiple of
    8 (sublane alignment of the 2-D blocks).  Prefer exact divisors of n_cls
    (no ragged final block), then an even number of grid steps so v7x's two
    TensorCores get balanced halves of the "parallel" class axis."""
    vmem_cap = _vmem_capacity_bytes()
    budget = vmem_cap // 2                         # headroom for Mosaic internals
    # Per-class VMEM bytes across pipelined buffers:
    #   prefix x2 (double buffer) + suffix x3 (Buffered(3)) + output x2.
    per_class = itemsize * ctx_dim * (2 * 1 + 3 * n_suffix + 2 * seq_len)
    fixed = 2 * itemsize * n_ctx * ctx_dim         # shared ctx block
    cap = _round8_down((budget - fixed) // max(per_class, 1))

    if n_cls <= cap:
        return n_cls                               # single grid step

    # Exact divisors of n_cls (multiples of 8), preferring even step counts.
    divisors = [t for t in range(cap, max(8, cap // 2) - 1, -8) if n_cls % t == 0]
    for t in divisors:
        if (n_cls // t) % 2 == 0:
            return t
    if divisors:
        return divisors[0]

    # Otherwise balance an even number of (possibly ragged) steps.
    n_steps = pl.cdiv(n_cls, cap)
    n_steps += n_steps % 2
    tc = ((pl.cdiv(n_cls, n_steps) + 7) // 8) * 8
    return max(8, min(cap, tc))


# ---------------------------------------------------------------------------
# Full concat forward (spec-faithful)
# ---------------------------------------------------------------------------

def _make_prompt_kernel(tc, n_ctx, ctx_dim):
    d = ctx_dim
    ctx_w = n_ctx * d

    def prompt_kernel(ctx_ref, prefix_ref, suffix_ref, out_ref):
        # Lane-flattened 2-D blocks:
        #   ctx_ref:    (1, n_ctx*D)     shared across every class
        #   prefix_ref: (tc, D)
        #   suffix_ref: (tc, n_suffix*D)
        #   out_ref:    (tc, seq_len*D)
        # Lane offsets 0, D, D+n_ctx*D are multiples of 128 for real CLIP dims
        # -> unmasked, lane-dense stores.
        out_ref[:, 0:d] = prefix_ref[...]
        # Single broadcasted store of the shared ctx rows for the whole tile.
        out_ref[:, d:d + ctx_w] = jnp.broadcast_to(ctx_ref[...], (tc, ctx_w))
        out_ref[:, d + ctx_w:] = suffix_ref[...]

    return prompt_kernel


def vl_prompt_learner_forward(ctx, token_prefix, token_suffix, *, class_tile=None):
    """Pallas implementation of VLPromptLearner.forward().

    Args:
      ctx:          (n_ctx, ctx_dim)
      token_prefix: (n_cls, 1, ctx_dim)
      token_suffix: (n_cls, seq_len - 1 - n_ctx, ctx_dim)
    Returns:
      prompts: (n_cls, 1 + n_ctx + n_suffix, ctx_dim)
    """
    n_ctx, ctx_dim = ctx.shape
    n_cls = token_prefix.shape[0]
    n_suffix = token_suffix.shape[1]
    seq_len = 1 + n_ctx + n_suffix

    # torch.cat dtype-promotion semantics (e.g. bf16 frozen embeddings + fp32 ctx).
    out_dtype = jnp.result_type(ctx.dtype, token_prefix.dtype, token_suffix.dtype)
    itemsize = jnp.dtype(out_dtype).itemsize

    tc = int(class_tile) if class_tile is not None else _pick_class_tile(
        n_cls, n_ctx, n_suffix, seq_len, ctx_dim, itemsize)
    tc = max(1, min(tc, n_cls))

    # Lane-flattened, row-major-contiguous views (free reshapes in the wrapper).
    ctx_2d = ctx.reshape(1, n_ctx * ctx_dim).astype(out_dtype)
    prefix_2d = token_prefix.reshape(n_cls, ctx_dim).astype(out_dtype)
    suffix_2d = token_suffix.reshape(n_cls, n_suffix * ctx_dim).astype(out_dtype)

    grid = (pl.cdiv(n_cls, tc),)
    vmem_cap = _vmem_capacity_bytes()
    vmem_limit = min(vmem_cap * 3 // 4, 96 * 1024 * 1024)   # 96 MiB v5e/v6e, 48 MiB v7x

    def build(suffix_buffers):
        if suffix_buffers == 2:
            suffix_spec = pl.BlockSpec((tc, n_suffix * ctx_dim), lambda i: (i, 0))
        else:
            suffix_spec = pl.BlockSpec((tc, n_suffix * ctx_dim), lambda i: (i, 0),
                                       pipeline_mode=pl.Buffered(suffix_buffers))
        return pl.pallas_call(
            _make_prompt_kernel(tc, n_ctx, ctx_dim),
            out_shape=jax.ShapeDtypeStruct((n_cls, seq_len * ctx_dim), out_dtype),
            grid_spec=pltpu.PrefetchScalarGridSpec(
                num_scalar_prefetch=0,
                grid=grid,
                in_specs=[
                    # Shared ctx: the same (only) block every grid step.
                    pl.BlockSpec((1, n_ctx * ctx_dim), lambda i: (0, 0)),
                    pl.BlockSpec((tc, ctx_dim), lambda i: (i, 0)),
                    suffix_spec,
                ],
                out_specs=pl.BlockSpec((tc, seq_len * ctx_dim), lambda i: (i, 0)),
            ),
            compiler_params=pltpu.CompilerParams(
                dimension_semantics=("parallel",),   # megacore split on v7x
                vmem_limit_bytes=vmem_limit,
            ),
            # Pure bandwidth op: let XLA overlap the surrounding text encoder.
            cost_estimate=pl.CostEstimate(
                flops=0, transcendentals=0,
                bytes_accessed=2 * n_cls * seq_len * ctx_dim * itemsize),
        )

    # Compute is ~0 so each step is DMA-in -> store -> DMA-out; 3-deep buffering
    # on the big suffix mover hides DMA issue latency.  Fall back to the default
    # double-buffering if this Mosaic build rejects pipeline_mode.
    try:
        out_flat = build(3)(ctx_2d, prefix_2d, suffix_2d)
    except Exception:
        out_flat = build(2)(ctx_2d, prefix_2d, suffix_2d)

    return out_flat.reshape(n_cls, seq_len, ctx_dim)


# ---------------------------------------------------------------------------
# Incremental forward: write only the ctx rows into an aliased prompts buffer
# ---------------------------------------------------------------------------

def _make_ctx_update_kernel(tc, n_ctx, ctx_dim, n_cls):
    def update_kernel(ctx_ref, prompts_hbm, out_hbm, vbuf, sem):
        # ctx_ref: (n_ctx, D) in VMEM.  prompts_hbm/out_hbm: the same aliased
        # (n_cls, seq, D) buffer left in HBM; only ctx rows are DMA-written.
        del prompts_hbm                          # aliased with out_hbm
        i = pl.program_id(0)
        # Clamp the last (possibly ragged) tile; overlapping rows are simply
        # rewritten with identical data.
        start = jnp.minimum(i * tc, n_cls - tc)
        vbuf[...] = jnp.broadcast_to(ctx_ref[...][None, :, :], (tc, n_ctx, ctx_dim))
        cp = pltpu.make_async_copy(
            vbuf, out_hbm.at[pl.ds(start, tc), pl.ds(1, n_ctx), :], sem)
        cp.start()
        cp.wait()

    return update_kernel


def vl_prompt_learner_update_ctx(prompts, ctx, *, class_tile=None):
    """Incremental VLPromptLearner.forward(): token_prefix / token_suffix are
    frozen buffers, so a pre-assembled prompts buffer only ever changes in its
    n_ctx context rows.  Writes ONLY those rows into `prompts` via
    input_output_aliases (~n_ctx/(2*seq_len) of the full-concat HBM traffic).
    Donate `prompts` under jit for a true in-place update."""
    n_cls, seq_len, ctx_dim = prompts.shape
    n_ctx = ctx.shape[0]
    dtype = prompts.dtype
    itemsize = jnp.dtype(dtype).itemsize

    if class_tile is None:
        budget = _vmem_capacity_bytes() // 4
        class_tile = _round8_down(budget // max(1, n_ctx * ctx_dim * itemsize))
    tc = max(1, min(int(class_tile), n_cls))

    return pl.pallas_call(
        _make_ctx_update_kernel(tc, n_ctx, ctx_dim, n_cls),
        out_shape=jax.ShapeDtypeStruct(prompts.shape, dtype),
        grid_spec=pltpu.PrefetchScalarGridSpec(
            num_scalar_prefetch=0,
            grid=(pl.cdiv(n_cls, tc),),
            in_specs=[
                pl.BlockSpec((n_ctx, ctx_dim), lambda i: (0, 0)),
                pl.BlockSpec(memory_space=pl.ANY),    # aliased prompts buffer
            ],
            out_specs=pl.BlockSpec(memory_space=pl.ANY),
            scratch_shapes=[
                pltpu.VMEM((tc, n_ctx, ctx_dim), dtype),
                pltpu.SemaphoreType.DMA,
            ],
        ),
        input_output_aliases={1: 0},
        compiler_params=pltpu.CompilerParams(
            dimension_semantics=("arbitrary",),
            vmem_limit_bytes=min(_vmem_capacity_bytes() * 3 // 4, 96 * 1024 * 1024),
        ),
        cost_estimate=pl.CostEstimate(
            flops=0, transcendentals=0,
            bytes_accessed=(n_cls * n_ctx + n_ctx) * ctx_dim * itemsize),
    )(ctx.astype(dtype), prompts)


# ---------------------------------------------------------------------------
# Self-test
# ---------------------------------------------------------------------------

if __name__ == "__main__":
    # Small synthetic configuration (stands in for cfg / classnames / CLIP).
    n_cls = 4        # number of class names
    n_ctx = 4        # N_CTX_TEXT
    ctx_dim = 128    # clip_model.ln_final.weight.shape[0] (small stand-in)
    seq_len = 16     # tokenized prompt length (CLIP uses 77; small here)
    n_suffix = seq_len - 1 - n_ctx
    dtype = jnp.float32

    key = jax.random.PRNGKey(0)
    k_ctx, k_pre, k_suf, k_ctx2 = jax.random.split(key, 4)

    # nn.init.normal_(ctx_vectors, std=0.02); synthetic frozen embeddings.
    ctx = (0.02 * jax.random.normal(k_ctx, (n_ctx, ctx_dim))).astype(dtype)
    token_prefix = jax.random.normal(k_pre, (n_cls, 1, ctx_dim)).astype(dtype)
    token_suffix = jax.random.normal(k_suf, (n_cls, n_suffix, ctx_dim)).astype(dtype)

    def ref_forward(c, p, s):
        cb = jnp.broadcast_to(c[None, :, :], (p.shape[0], c.shape[0], c.shape[1]))
        return jnp.concatenate([p, cb, s], axis=1)

    # --- Full concat path (single tile) ---
    prompts = jax.block_until_ready(
        vl_prompt_learner_forward(ctx, token_prefix, token_suffix))
    assert prompts.shape == (n_cls, seq_len, ctx_dim), prompts.shape
    assert prompts.dtype == dtype
    assert jnp.allclose(prompts, ref_forward(ctx, token_prefix, token_suffix)), \
        "mismatch vs reference (single-tile path)"

    # --- Multi-tile path (several classes per step, several steps) ---
    n_cls2 = 24
    k2p, k2s = jax.random.split(jax.random.PRNGKey(1), 2)
    pre2 = jax.random.normal(k2p, (n_cls2, 1, ctx_dim)).astype(dtype)
    suf2 = jax.random.normal(k2s, (n_cls2, n_suffix, ctx_dim)).astype(dtype)
    out2 = jax.block_until_ready(
        vl_prompt_learner_forward(ctx, pre2, suf2, class_tile=8))
    assert jnp.allclose(out2, ref_forward(ctx, pre2, suf2)), \
        "mismatch vs reference (multi-tile path)"

    # --- Ragged final tile (n_cls % class_tile != 0) ---
    n_cls3 = 20
    k3p, k3s = jax.random.split(jax.random.PRNGKey(2), 2)
    pre3 = jax.random.normal(k3p, (n_cls3, 1, ctx_dim)).astype(dtype)
    suf3 = jax.random.normal(k3s, (n_cls3, n_suffix, ctx_dim)).astype(dtype)
    out3 = jax.block_until_ready(
        vl_prompt_learner_forward(ctx, pre3, suf3, class_tile=8))
    assert jnp.allclose(out3, ref_forward(ctx, pre3, suf3)), \
        "mismatch vs reference (ragged-tile path)"

    # --- Mixed dtypes (frozen bf16 embeddings, fp32 learnable ctx) ---
    out_mixed = jax.block_until_ready(
        vl_prompt_learner_forward(ctx, token_prefix.astype(jnp.bfloat16),
                                  token_suffix.astype(jnp.bfloat16)))
    assert out_mixed.dtype == jnp.float32
    assert jnp.allclose(out_mixed, ref_forward(ctx, token_prefix.astype(jnp.bfloat16),
                                               token_suffix.astype(jnp.bfloat16))), \
        "mismatch vs reference (mixed-dtype path)"

    # --- Incremental ctx-update path (frozen prefix/suffix, aliased buffer) ---
    ctx_new = (0.02 * jax.random.normal(k_ctx2, (n_ctx, ctx_dim))).astype(dtype)
    upd = jax.block_until_ready(vl_prompt_learner_update_ctx(prompts, ctx_new))
    assert jnp.allclose(upd, ref_forward(ctx_new, token_prefix, token_suffix)), \
        "mismatch vs reference (aliased ctx-update path)"
    # Same path with multiple tiles + a clamped ragged last tile.
    upd3 = jax.block_until_ready(vl_prompt_learner_update_ctx(out3, ctx_new, class_tile=8))
    assert jnp.allclose(upd3, ref_forward(ctx_new, pre3, suf3)), \
        "mismatch vs reference (aliased ctx-update, ragged tiles)"

    print("KERNEL_OK")
</pallas_src>

<mosaic_0001>
module attributes {stable_mosaic.version = 11 : i64} {
  func.func @prompt_kernel(%arg0: i32, %arg1: memref<1x512xf32, #tpu.memory_space<vmem>>, %arg2: memref<4x128xf32, #tpu.memory_space<vmem>>, %arg3: memref<4x1408xf32, #tpu.memory_space<vmem>>, %arg4: memref<4x2048xf32, #tpu.memory_space<vmem>>) attributes {dimension_semantics = [#tpu.dimension_semantics<parallel>], iteration_bounds = array<i64: 1>, scalar_prefetch = 0 : i64, scratch_operands = 0 : i64, tpu.core_type = #tpu.core_type<tc>, window_params = [{pipeline_mode = #tpu.pipeline_mode<synchronous>, transform_indices = @transform_0, window_bounds = array<i64: 1, 512>}, {transform_indices = @transform_1, window_bounds = array<i64: 4, 128>}, {transform_indices = @transform_2, window_bounds = array<i64: 4, 1408>}, {transform_indices = @transform_3, window_bounds = array<i64: 4, 2048>}]} {
    %c0 = arith.constant 0 : index
    %c0_0 = arith.constant 0 : index
    %0 = vector.load %arg2[%c0, %c0_0] : memref<4x128xf32, #tpu.memory_space<vmem>>, vector<4x128xf32>
    %c0_1 = arith.constant 0 : index
    %c0_2 = arith.constant 0 : index
    %1 = vector.load %arg4[%c0_1, %c0_2] : memref<4x2048xf32, #tpu.memory_space<vmem>>, vector<4x128xf32>
    tpu.vector_store %arg4[%c0_1, %c0_2], %0 {strides = array<i32>} : memref<4x2048xf32, #tpu.memory_space<vmem>>, vector<4x128xf32>,
    %c0_3 = arith.constant 0 : index
    %c0_4 = arith.constant 0 : index
    %2 = vector.load %arg1[%c0_3, %c0_4] : memref<1x512xf32, #tpu.memory_space<vmem>>, vector<1x512xf32>
    %3 = vector.shape_cast %2 : vector<1x512xf32> to vector<1x512xf32>
    %4 = vector.broadcast %3 : vector<1x512xf32> to vector<4x512xf32>
    %c0_5 = arith.constant 0 : index
    %c128 = arith.constant 128 : index
    %5 = vector.load %arg4[%c0_5, %c128] : memref<4x2048xf32, #tpu.memory_space<vmem>>, vector<4x512xf32>
    tpu.vector_store %arg4[%c0_5, %c128], %4 {strides = array<i32>} : memref<4x2048xf32, #tpu.memory_space<vmem>>, vector<4x512xf32>,
    %c0_6 = arith.constant 0 : index
    %c0_7 = arith.constant 0 : index
    %6 = vector.load %arg3[%c0_6, %c0_7] : memref<4x1408xf32, #tpu.memory_space<vmem>>, vector<4x1408xf32>
    %c0_8 = arith.constant 0 : index
    %c640 = arith.constant 640 : index
    %7 = vector.load %arg4[%c0_8, %c640] : memref<4x2048xf32, #tpu.memory_space<vmem>>, vector<4x1408xf32>
    tpu.vector_store %arg4[%c0_8, %c640], %6 {strides = array<i32>} : memref<4x2048xf32, #tpu.memory_space<vmem>>, vector<4x1408xf32>,
    return
  }
  func.func @transform_0(%arg0: i32) -> (i32, i32) {
    %c0_i32 = arith.constant 0 : i32
    %c0_i32_0 = arith.constant 0 : i32
    %c0_i32_1 = arith.constant 0 : i32
    return %c0_i32, %c0_i32_0 : i32, i32
  }
  func.func @transform_1(%arg0: i32) -> (i32, i32) {
    %c0_i32 = arith.constant 0 : i32
    %c0_i32_0 = arith.constant 0 : i32
    return %arg0, %c0_i32 : i32, i32
  }
  func.func @transform_2(%arg0: i32) -> (i32, i32) {
    %c0_i32 = arith.constant 0 : i32
    %c0_i32_0 = arith.constant 0 : i32
    return %arg0, %c0_i32 : i32, i32
  }
  func.func @transform_3(%arg0: i32) -> (i32, i32) {
    %c0_i32 = arith.constant 0 : i32
    %c0_i32_0 = arith.constant 0 : i32
    return %arg0, %c0_i32 : i32, i32
  }
}

</mosaic_0001>

<llo_original>
// kernel: tpu_custom_call.1
$region0: #{tpu_custom_call.1}
  #allocation0 [shape = 'u32[]', space=smem, size = 0x4, offset = 0x4, fixed_abs, tag = 'smem constant byte address 0x4 - core index']
  #allocation1 [shape = 'u32[144,128]{1,0:T(1,128)}', space=vmem, size = 0x12000, scoped, tag = 'internal scratch']
  %s0 = inlined_call_operand.hbm [shape: f32[1,512], index: 0, kind: input, shape index: {}]
  %s1 = inlined_call_operand.hbm [shape: f32[4,128], index: 1, kind: input, shape index: {}]
  %s2 = inlined_call_operand.hbm [shape: f32[4,1408], index: 2, kind: input, shape index: {}]
  %s3 = inlined_call_operand.hbm [shape: f32[4,2048], index: 3, kind: output, shape index: {}]
  %s4 = sld [smem:[#allocation0]]
  $region34: #{tpu_custom_call.1} parent=0
    _
  %s6 = ssub.s32 1, %s4
  %s7 = scalar_select 0, %s6, %s4
  $region1: #{tpu_custom_call.1} parent=0
    #allocation2 [shape = 'u8[2048]{0}', space=vmem, size = 0x800, scoped, tag = 'input window, operand 0, single buffered']
    #allocation3 [shape = 's32[1]{0}', space=sflag, size = 0x4, scoped, tag = 'scoped memory for tpu_custom_call.1']
    #allocation4 [shape = 's32[1]{0}', space=sflag, size = 0x4, scoped, tag = 'scoped memory for tpu_custom_call.1']
    #allocation5 [shape = 'u8[2048]{0}', space=vmem, size = 0x800, scoped, tag = 'input window, operand 1, single buffered']
    #allocation6 [shape = 's32[1]{0}', space=sflag, size = 0x4, scoped, tag = 'scoped memory for tpu_custom_call.1']
    #allocation7 [shape = 'u8[22528]{0}', space=vmem, size = 0x5800, scoped, tag = 'input window, operand 2, single buffered']
    #allocation8 [shape = 'u8[32768]{0}', space=vmem, size = 0x8000, scoped, tag = 'output window, operand 0, single buffered']
    %8 = vsyncpa [#allocation3], 0
    %9 = vsyncpa [#allocation6], 0
    %10 = vsyncpa [#allocation4], 0
    // Predicated region
    $region2: #{tpu_custom_call.1} parent=1 // pred_check
      _
    $region3: #{tpu_custom_call.1} parent=1 // pred_check_branch
      %12 = sbr.rel (0) target = $region5
    $region4: #{tpu_custom_call.1} parent=1 // pred_region
      %s14 = ssub.s32 64, 64
      %15 = vsyncadd [#allocation3], %s14
      %s17 = sshll.u32 [#allocation2], 4
      %s18 = int_to_ptr.vmem [resolvable:$true] %s17
      %20 = dma.hbm_to_vmem [thread:$0]  %s0, 64, %s18, [#allocation3]
    $region5: #{tpu_custom_call.1} parent=1 // pred_fallthru
      _
    // Predicated region
    $region6: #{tpu_custom_call.1} parent=1 // pred_check
      _
    $region7: #{tpu_custom_call.1} parent=1 // pred_check_branch
      %22 = sbr.rel (0) target = $region9
    $region8: #{tpu_custom_call.1} parent=1 // pred_region
      %s24 = ssub.s32 64, 64
      %25 = vsyncadd [#allocation6], %s24
      %s27 = sshll.u32 [#allocation5], 4
      %s28 = int_to_ptr.vmem [resolvable:$true] %s27
      %30 = dma.hbm_to_vmem [thread:$0]  %s1, 64, %s28, [#allocation6]
    $region9: #{tpu_custom_call.1} parent=1 // pred_fallthru
      _
    // Predicated region
    $region10: #{tpu_custom_call.1} parent=1 // pred_check
      _
    $region11: #{tpu_custom_call.1} parent=1 // pred_check_branch
      %32 = sbr.rel (0) target = $region13
    $region12: #{tpu_custom_call.1} parent=1 // pred_region
      %s34 = ssub.s32 704, 704
      %35 = vsyncadd [#allocation6], %s34
      %s37 = sshll.u32 [#allocation7], 4
      %s38 = int_to_ptr.vmem [resolvable:$true] %s37
      %40 = dma.hbm_to_vmem [thread:$0]  %s2, 704, %s38, [#allocation6]
    $region13: #{tpu_custom_call.1} parent=1 // pred_fallthru
      _
    // Predicated region
    $region14: #{tpu_custom_call.1} parent=1 // pred_check
      _
    $region15: #{tpu_custom_call.1} parent=1 // pred_check_branch
      %42 = sbr.rel (0) target = $region17
    $region16: #{tpu_custom_call.1} parent=1 // pred_region
      %43 = dma.done [#allocation3], 64
    $region17: #{tpu_custom_call.1} parent=1 // pred_fallthru
      _
    // Predicated region
    $region18: #{tpu_custom_call.1} parent=1 // pred_check
      _
    $region19: #{tpu_custom_call.1} parent=1 // pred_check_branch
      %45 = sbr.rel (0) target = $region21
    $region20: #{tpu_custom_call.1} parent=1 // pred_region
      %46 = dma.done [#allocation6], 64
    $region21: #{tpu_custom_call.1} parent=1 // pred_fallthru
      _
    // Predicated region
    $region22: #{tpu_custom_call.1} parent=1 // pred_check
      _
    $region23: #{tpu_custom_call.1} parent=1 // pred_check_branch
      %48 = sbr.rel (0) target = $region25
    $region24: #{tpu_custom_call.1} parent=1 // pred_region
      %49 = dma.done [#allocation6], 704
    $region25: #{tpu_custom_call.1} parent=1 // pred_fallthru
      _
    %v50 = vld [vmem:[#allocation5] sm:$0xf]
    %51 = vst [vmem:[#allocation8] sm:$0xf] %v50
    %v52 = vld [vmem:[#allocation2] sm:$0xf]
    %v54 = vlaneseq
    %v55 = vshrl.u32 %v54, 7
    %v56 = vsub.s32 0, %v55
    %v57 = vrot.slane %v52, %v56
    %v58 = vlaneseq
    %v59 = vshrl.u32 %v58, 7
    %v60 = vsub.s32 1, %v59
    %v61 = vrot.slane %v52, %v60
    %v62 = vlaneseq
    %v63 = vshrl.u32 %v62, 7
    %v64 = vsub.s32 2, %v63
    %v65 = vrot.slane %v52, %v64
    %v66 = vlaneseq
    %v67 = vshrl.u32 %v66, 7
    %v68 = vsub.s32 3, %v67
    %v69 = vrot.slane %v52, %v68
    %v70 = vcombine.low %v57, %v61
    %v71 = vcombine.low %v65, %v69
    %74 = vst [vmem:[#allocation8 + $0x4] sm:$0xff] %v70
    %75 = vst [vmem:[#allocation8 + $0xc] sm:$0xff] %v71
    %v76 = vld [vmem:[#allocation7] sm:$0xff]
    %v77 = vld [vmem:[#allocation7 + $0x8] sm:$0xff]
    %v78 = vld [vmem:[#allocation7 + $0x10] sm:$0xff]
    %v79 = vld [vmem:[#allocation7 + $0x18] sm:$0xff]
    %v80 = vld [vmem:[#allocation7 + $0x20] sm:$0xff]
    %v81 = vld [vmem:[#allocation7 + $0x28] sm:$0xf]
    %82 = vst [vmem:[#allocation8 + $0x14] sm:$0xff] %v76
    %83 = vst [vmem:[#allocation8 + $0x1c] sm:$0xff] %v77
    %84 = vst [vmem:[#allocation8 + $0x24] sm:$0xff] %v78
    %85 = vst [vmem:[#allocation8 + $0x2c] sm:$0xff] %v79
    %86 = vst [vmem:[#allocation8 + $0x34] sm:$0xff] %v80
    %87 = vst [vmem:[#allocation8 + $0x3c] sm:$0xf] %v81
    // Predicated region
    $region26: #{tpu_custom_call.1} parent=1 // pred_check
      _
    $region27: #{tpu_custom_call.1} parent=1 // pred_check_branch
      %89 = sbr.rel (0) target = $region29
    $region28: #{tpu_custom_call.1} parent=1 // pred_region
      %s91 = ssub.s32 1024, 1024
      %92 = vsyncadd [#allocation4], %s91
      %s94 = sshll.u32 [#allocation8], 4
      %s95 = int_to_ptr.vmem [resolvable:$true] %s94
      %97 = dma.vmem_to_hbm [thread:$0]  %s95, 1024, %s3, [#allocation4]
    $region29: #{tpu_custom_call.1} parent=1 // pred_fallthru
      _
    // Predicated region
    $region30: #{tpu_custom_call.1} parent=1 // pred_check
      _
    $region31: #{tpu_custom_call.1} parent=1 // pred_check_branch
      %99 = sbr.rel (0) target = $region33
    $region32: #{tpu_custom_call.1} parent=1 // pred_region
      %100 = dma.done [#allocation4], 1024
    $region33: #{tpu_custom_call.1} parent=1 // pred_fallthru
      _
    %101 = vsyncpa [#allocation3], 1
    %102 = vsyncpa [#allocation6], 1
    %103 = vsyncpa [#allocation4], 1

</llo_original>
